<compile_context>
chip_gen: v7x
topology: tpu7x:2x2x1
jax: 0.10.0
libtpu: 0.0.40
codegen_flags: <defaults>
</compile_context>

<pallas_src>
import jax
import jax.numpy as jnp
from jax.experimental import pallas as pl
from jax.experimental.pallas import tpu as pltpu

IN_DIM = 360
HID_DIM = 180


def _ceil_to(a: int, m: int) -> int:
    return ((a + m - 1) // m) * m


def fc2_kernel(x_ref, w1_ref, b1_ref, w2_ref, b2_ref, o_ref):
    # x_ref:  [TB, 360] f32        (streamed over the batch)
    # w1_ref: [360, 180] f32       (VMEM-resident, [in, out] layout)
    # b1_ref: [1, 180] f32, w2_ref: [1, 180] f32 (layer-2 weight row), b2_ref: [1, 1] f32
    # o_ref:  [1, 1, TB] f32       (lane-dense output row for this batch tile)
    x = x_ref[...].astype(jnp.bfloat16)      # in-kernel cast -> MXU operand (no wrapper convert)
    w1 = w1_ref[...].astype(jnp.bfloat16)    # tiny, VMEM-resident
    # Layer 1 on the MXU with f32 accumulation.
    h = jnp.dot(x, w1, preferred_element_type=jnp.float32)            # [TB, 180] f32
    h = jnp.maximum(h + b1_ref[...], 0.0)                             # bias + ReLU (VPU, f32)
    # Layer 2 (out_features=1): VPU multiply + cross-lane reduce (XLU) — no wasted MXU pass.
    z_col = jnp.sum(h * w2_ref[...], axis=-1, keepdims=True)          # [TB, 1]
    # Relayout the column to a lane-dense row (XLU, spare slot) so the sigmoid tail and the
    # store operate on dense vregs instead of a 128x-padded column.
    z_row = jnp.transpose(z_col) + b2_ref[...]                        # [1, TB]
    # Sigmoid: exp on the EUP, approximate reciprocal on the EUP (own VLIW slot).
    y = pl.reciprocal(1.0 + jnp.exp(-z_row), approx=True)
    o_ref[...] = y[None].astype(o_ref.dtype)                          # [1, 1, TB]


def fc2_forward(x, w1, b1, w2_row, b2, *, tb_max=4096):
    """x: [B, 360] float32 -> [B, 1] float32.

    w1: [360, 180] ([in, out] layout); b1: [1, 180]; w2_row: [1, 180]; b2: [1, 1].
    """
    B = x.shape[0]

    # Sublane alignment only (<= 7 pad rows, and only when B % 8 != 0). Never pad to TB.
    B8 = _ceil_to(B, 8)
    if B8 != B:
        x = jnp.pad(x, ((0, B8 - B), (0, 0)))

    # Batch tile: aim for >= 4 grid steps (pipeline overlap + v7x megacore), floor 512 rows,
    # cap tb_max rows; never exceed the (aligned) batch. Last grid block may be ragged —
    # its rows compute on garbage and are sliced off below.
    TB = max(512, _ceil_to(pl.cdiv(B8, 4), 8))
    TB = min(TB, tb_max, B8)
    grid = pl.cdiv(B8, TB)

    cost = pl.CostEstimate(
        flops=2 * B8 * IN_DIM * HID_DIM + 2 * B8 * HID_DIM,
        transcendentals=B8,
        bytes_accessed=B8 * IN_DIM * 4 + B8 * 4 + (IN_DIM * HID_DIM + 2 * HID_DIM + 1) * 4,
    )

    out = pl.pallas_call(
        fc2_kernel,
        out_shape=jax.ShapeDtypeStruct((grid, 1, TB), jnp.float32),
        grid=(grid,),
        in_specs=[
            pl.BlockSpec((TB, IN_DIM), lambda i: (i, 0)),        # x streams over the batch
            pl.BlockSpec((IN_DIM, HID_DIM), lambda i: (0, 0)),   # w1 VMEM-resident
            pl.BlockSpec((1, HID_DIM), lambda i: (0, 0)),        # b1 VMEM-resident
            pl.BlockSpec((1, HID_DIM), lambda i: (0, 0)),        # w2 row VMEM-resident
            pl.BlockSpec((1, 1), lambda i: (0, 0)),              # b2 VMEM-resident
        ],
        out_specs=pl.BlockSpec((1, 1, TB), lambda i: (i, 0, 0)),  # lane-dense row per step
        compiler_params=pltpu.CompilerParams(
            dimension_semantics=("parallel",),   # megacore sharding on v7x
        ),
        cost_estimate=cost,
    )(x, w1, b1, w2_row, b2)

    # (grid, 1, TB) -> (grid*TB, 1); drop alignment / ragged-tail rows.
    return out.reshape(grid * TB, 1)[:B]


def init_params(key):
    """Deterministic init matching nn.Linear default: U(-1/sqrt(fan_in), 1/sqrt(fan_in))."""
    k1, k2, k3, k4 = jax.random.split(key, 4)
    bound1 = 1.0 / jnp.sqrt(float(IN_DIM))
    bound2 = 1.0 / jnp.sqrt(float(HID_DIM))
    w1 = jax.random.uniform(k1, (IN_DIM, HID_DIM), jnp.float32, -bound1, bound1)  # [in, out]
    b1 = jax.random.uniform(k2, (1, HID_DIM), jnp.float32, -bound1, bound1)
    w2_row = jax.random.uniform(k3, (1, HID_DIM), jnp.float32, -bound2, bound2)   # layer-2 weight row
    b2 = jax.random.uniform(k4, (1, 1), jnp.float32, -bound2, bound2)
    return w1, b1, w2_row, b2


if __name__ == "__main__":
    key = jax.random.PRNGKey(0)
    kx, kp = jax.random.split(key)

    B = 2
    x = jax.random.normal(kx, (B, IN_DIM), jnp.float32)
    w1, b1, w2_row, b2 = init_params(kp)

    out = fc2_forward(x, w1, b1, w2_row, b2)
    out = jax.block_until_ready(out)
    assert out.shape == (B, 1)

    # Reference mirroring the kernel's bf16 matmul-1 / f32 accumulation:
    h_ref = jnp.dot(x.astype(jnp.bfloat16), w1.astype(jnp.bfloat16),
                    preferred_element_type=jnp.float32)
    h_ref = jnp.maximum(h_ref + b1, 0.0)
    z_ref = jnp.sum(h_ref * w2_row, axis=-1, keepdims=True) + b2
    ref_bf16 = jax.nn.sigmoid(z_ref)
    assert jnp.allclose(out, ref_bf16, atol=2e-3, rtol=2e-3)

    # Loose check against the pure-f32 module semantics (bf16 matmul approximation).
    ref_f32 = jax.nn.sigmoid(jnp.maximum(x @ w1 + b1, 0.0) @ w2_row.T + b2)
    assert jnp.allclose(out, ref_f32, atol=5e-2, rtol=5e-2)

    print("KERNEL_OK")
</pallas_src>

<mosaic_0001>
module attributes {stable_mosaic.version = 11 : i64} {
  func.func @fc2_kernel(%arg0: i32, %arg1: memref<8x360xf32, #tpu.memory_space<vmem>>, %arg2: memref<360x180xf32, #tpu.memory_space<vmem>>, %arg3: memref<1x180xf32, #tpu.memory_space<vmem>>, %arg4: memref<1x180xf32, #tpu.memory_space<vmem>>, %arg5: memref<1x1xf32, #tpu.memory_space<vmem>>, %arg6: memref<1x1x8xf32, #tpu.memory_space<vmem>>) attributes {dimension_semantics = [#tpu.dimension_semantics<parallel>], iteration_bounds = array<i64: 1>, scalar_prefetch = 0 : i64, scratch_operands = 0 : i64, tpu.core_type = #tpu.core_type<tc>, window_params = [{transform_indices = @transform_0, window_bounds = array<i64: 8, 360>}, {pipeline_mode = #tpu.pipeline_mode<synchronous>, transform_indices = @transform_1, window_bounds = array<i64: 360, 180>}, {pipeline_mode = #tpu.pipeline_mode<synchronous>, transform_indices = @transform_2, window_bounds = array<i64: 1, 180>}, {pipeline_mode = #tpu.pipeline_mode<synchronous>, transform_indices = @transform_3, window_bounds = array<i64: 1, 180>}, {pipeline_mode = #tpu.pipeline_mode<synchronous>, transform_indices = @transform_4, window_bounds = array<i64: 1, 1>}, {transform_indices = @transform_5, window_bounds = array<i64: 1, 1, 8>}]} {
    %c0 = arith.constant 0 : index
    %c0_0 = arith.constant 0 : index
    %0 = vector.load %arg1[%c0, %c0_0] : memref<8x360xf32, #tpu.memory_space<vmem>>, vector<8x360xf32>
    %1 = arith.truncf %0 : vector<8x360xf32> to vector<8x360xbf16>
    %c0_1 = arith.constant 0 : index
    %c0_2 = arith.constant 0 : index
    %2 = vector.load %arg2[%c0_1, %c0_2] : memref<360x180xf32, #tpu.memory_space<vmem>>, vector<360x180xf32>
    %3 = arith.truncf %2 : vector<360x180xf32> to vector<360x180xbf16>
    %cst = arith.constant dense<0.000000e+00> : vector<8x180xf32>
    %4 = tpu.matmul %1, %3, %cst {dimension_numbers = #tpu.dot_dimension_numbers<[1], [0], [0], [1], [0, 0, 1, 1], [], []>} : vector<8x360xbf16>, vector<360x180xbf16>, vector<8x180xf32> -> vector<8x180xf32>
    %c0_3 = arith.constant 0 : index
    %c0_4 = arith.constant 0 : index
    %5 = vector.load %arg3[%c0_3, %c0_4] : memref<1x180xf32, #tpu.memory_space<vmem>>, vector<1x180xf32>
    %6 = vector.broadcast %5 : vector<1x180xf32> to vector<8x180xf32>
    %7 = arith.addf %4, %6 : vector<8x180xf32>
    %cst_5 = arith.constant 0.000000e+00 : f32
    %8 = vector.broadcast %cst_5 : f32 to vector<8x180xf32>
    %9 = arith.maximumf %7, %8 : vector<8x180xf32>
    %c0_6 = arith.constant 0 : index
    %c0_7 = arith.constant 0 : index
    %10 = vector.load %arg4[%c0_6, %c0_7] : memref<1x180xf32, #tpu.memory_space<vmem>>, vector<1x180xf32>
    %11 = vector.broadcast %10 : vector<1x180xf32> to vector<8x180xf32>
    %12 = arith.mulf %9, %11 : vector<8x180xf32>
    %cst_8 = arith.constant dense<0.000000e+00> : vector<8xf32>
    %13 = vector.multi_reduction <add>, %12, %cst_8 [1] : vector<8x180xf32> to vector<8xf32>
    %14 = vector.shape_cast %13 : vector<8xf32> to vector<8x1xf32>
    %15 = tpu.transpose %14, [1, 0] : vector<8x1xf32> -> vector<1x8xf32>
    %c0_9 = arith.constant 0 : index
    %c0_10 = arith.constant 0 : index
    %16 = vector.load %arg5[%c0_9, %c0_10] : memref<1x1xf32, #tpu.memory_space<vmem>>, vector<1x1xf32>
    %17 = vector.broadcast %16 : vector<1x1xf32> to vector<1x8xf32>
    %18 = arith.addf %15, %17 : vector<1x8xf32>
    %cst_11 = arith.constant 0.000000e+00 : f32
    %19 = vector.broadcast %cst_11 : f32 to vector<1x8xf32>
    %20 = arith.subf %19, %18 : vector<1x8xf32>
    %21 = math.exp %20 : vector<1x8xf32>
    %cst_12 = arith.constant 1.000000e+00 : f32
    %22 = vector.broadcast %cst_12 : f32 to vector<1x8xf32>
    %23 = arith.addf %22, %21 : vector<1x8xf32>
    %24 = tpu.reciprocal %23 {approx = true} : vector<1x8xf32> -> vector<1x8xf32>
    %25 = vector.shape_cast %24 : vector<1x8xf32> to vector<1x1x8xf32>
    %c0_13 = arith.constant 0 : index
    %c0_14 = arith.constant 0 : index
    %c0_15 = arith.constant 0 : index
    %26 = vector.load %arg6[%c0_13, %c0_14, %c0_15] : memref<1x1x8xf32, #tpu.memory_space<vmem>>, vector<1x1x8xf32>
    tpu.vector_store %arg6[%c0_13, %c0_14, %c0_15], %25 {strides = array<i32>} : memref<1x1x8xf32, #tpu.memory_space<vmem>>, vector<1x1x8xf32>,
    return
  }
  func.func @transform_0(%arg0: i32) -> (i32, i32) {
    %c0_i32 = arith.constant 0 : i32
    %c0_i32_0 = arith.constant 0 : i32
    return %arg0, %c0_i32 : i32, i32
  }
  func.func @transform_1(%arg0: i32) -> (i32, i32) {
    %c0_i32 = arith.constant 0 : i32
    %c0_i32_0 = arith.constant 0 : i32
    %c0_i32_1 = arith.constant 0 : i32
    return %c0_i32, %c0_i32_0 : i32, i32
  }
  func.func @transform_2(%arg0: i32) -> (i32, i32) {
    %c0_i32 = arith.constant 0 : i32
    %c0_i32_0 = arith.constant 0 : i32
    %c0_i32_1 = arith.constant 0 : i32
    return %c0_i32, %c0_i32_0 : i32, i32
  }
  func.func @transform_3(%arg0: i32) -> (i32, i32) {
    %c0_i32 = arith.constant 0 : i32
    %c0_i32_0 = arith.constant 0 : i32
    %c0_i32_1 = arith.constant 0 : i32
    return %c0_i32, %c0_i32_0 : i32, i32
  }
  func.func @transform_4(%arg0: i32) -> (i32, i32) {
    %c0_i32 = arith.constant 0 : i32
    %c0_i32_0 = arith.constant 0 : i32
    %c0_i32_1 = arith.constant 0 : i32
    return %c0_i32, %c0_i32_0 : i32, i32
  }
  func.func @transform_5(%arg0: i32) -> (i32, i32, i32) {
    %c0_i32 = arith.constant 0 : i32
    %c0_i32_0 = arith.constant 0 : i32
    %c0_i32_1 = arith.constant 0 : i32
    return %arg0, %c0_i32, %c0_i32_0 : i32, i32, i32
  }
}

</mosaic_0001>

<llo_original>
// kernel: tpu_custom_call.1
$region0: #{tpu_custom_call.1}
  #allocation0 [shape = 'u32[]', space=smem, size = 0x4, offset = 0x4, fixed_abs, tag = 'smem constant byte address 0x4 - core index']
  #allocation1 [shape = 'u32[144,128]{1,0:T(1,128)}', space=vmem, size = 0x12000, scoped, tag = 'internal scratch']
  #allocation2 [shape = 'f32[1,1]{1,0:T(1,128)S(1)}', space=vmem, size = 0x200, scoped, tag = 'scoped memory for tpu_custom_call.1']
  %s0 = inlined_call_operand.vmem [shape: f32[8,360], index: 0, kind: input, shape index: {}]
  %s1 = inlined_call_operand.vmem [shape: f32[360,180], index: 1, kind: input, shape index: {}]
  %s2 = inlined_call_operand.vmem [shape: f32[1,180], index: 2, kind: input, shape index: {}]
  %s3 = inlined_call_operand.vmem [shape: f32[1,180], index: 3, kind: input, shape index: {}]
  %s4 = inlined_call_operand.<no memory space> [shape: f32[1,1], index: 4, kind: input, shape index: {}]
  %s5 = inlined_call_operand.hbm [shape: f32[1,1,8], index: 5, kind: output, shape index: {}]
  %s6 = sld [smem:[#allocation0]]
  $region30: #{tpu_custom_call.1} parent=0
    _
  %s8 = ssub.s32 1, %s6
  %s9 = scalar_select 0, %s8, %s6
  %v10 = vstv %s4
  %11 = vst [vmem:[#allocation2] sm:$0x1] %v10
  $region1: #{tpu_custom_call.1} parent=0
    #allocation3 [shape = 'u8[512]{0}', space=vmem, size = 0x400, scoped, tag = 'output window, operand 0, single buffered']
    #allocation4 [shape = 's32[1]{0}', space=sflag, size = 0x4, scoped, tag = 'scoped memory for tpu_custom_call.1']
    %12 = vsyncpa [#allocation4], 0
    // Predicated region
    $region2: #{tpu_custom_call.1} parent=1 // pred_check
      _
    $region3: #{tpu_custom_call.1} parent=1 // pred_check_branch
      %14 = sbr.rel (0) target = $region5
    $region4: #{tpu_custom_call.1} parent=1 // pred_region
      _
    $region5: #{tpu_custom_call.1} parent=1 // pred_fallthru
      _
    // Predicated region
    $region6: #{tpu_custom_call.1} parent=1 // pred_check
      _
    $region7: #{tpu_custom_call.1} parent=1 // pred_check_branch
      %16 = sbr.rel (0) target = $region9
    $region8: #{tpu_custom_call.1} parent=1 // pred_region
      _
    $region9: #{tpu_custom_call.1} parent=1 // pred_fallthru
      _
    // Predicated region
    $region10: #{tpu_custom_call.1} parent=1 // pred_check
      _
    $region11: #{tpu_custom_call.1} parent=1 // pred_check_branch
      %18 = sbr.rel (0) target = $region13
    $region12: #{tpu_custom_call.1} parent=1 // pred_region
      _
    $region13: #{tpu_custom_call.1} parent=1 // pred_fallthru
      _
    // Predicated region
    $region14: #{tpu_custom_call.1} parent=1 // pred_check
      _
    $region15: #{tpu_custom_call.1} parent=1 // pred_check_branch
      %20 = sbr.rel (0) target = $region17
    $region16: #{tpu_custom_call.1} parent=1 // pred_region
      _
    $region17: #{tpu_custom_call.1} parent=1 // pred_fallthru
      _
    // Predicated region
    $region18: #{tpu_custom_call.1} parent=1 // pred_check
      _
    $region19: #{tpu_custom_call.1} parent=1 // pred_check_branch
      %22 = sbr.rel (0) target = $region21
    $region20: #{tpu_custom_call.1} parent=1 // pred_region
      _
    $region21: #{tpu_custom_call.1} parent=1 // pred_fallthru
      _
    %v24 = vld [vmem:[%s0] sm:$0xff]
    %v25 = vld [vmem:[%s0 + $0x8] sm:$0xff]
    %v26 = vld [vmem:[%s0 + $0x10] sm:$0xff]
    %v27 = vpack.c.bf16 %v24, %v24
    %v28 = vpack.c.bf16 %v25, %v25
    %v29 = vpack.c.bf16 %v26, %v26
    %v30 = vld [vmem:[%s1] sm:$0xff]
    %v31 = vld [vmem:[%s1 + $0x8] sm:$0xff]
    %v32 = vld [vmem:[%s1 + $0x10] sm:$0xff]
    %v33 = vld [vmem:[%s1 + $0x18] sm:$0xff]
    %v34 = vld [vmem:[%s1 + $0x20] sm:$0xff]
    %v35 = vld [vmem:[%s1 + $0x28] sm:$0xff]
    %v36 = vld [vmem:[%s1 + $0x30] sm:$0xff]
    %v37 = vld [vmem:[%s1 + $0x38] sm:$0xff]
    %v38 = vld [vmem:[%s1 + $0x40] sm:$0xff]
    %v39 = vld [vmem:[%s1 + $0x48] sm:$0xff]
    %v40 = vld [vmem:[%s1 + $0x50] sm:$0xff]
    %v41 = vld [vmem:[%s1 + $0x58] sm:$0xff]
    %v42 = vld [vmem:[%s1 + $0x60] sm:$0xff]
    %v43 = vld [vmem:[%s1 + $0x68] sm:$0xff]
    %v44 = vld [vmem:[%s1 + $0x70] sm:$0xff]
    %v45 = vld [vmem:[%s1 + $0x78] sm:$0xff]
    %v46 = vld [vmem:[%s1 + $0x80] sm:$0xff]
    %v47 = vld [vmem:[%s1 + $0x88] sm:$0xff]
    %v48 = vld [vmem:[%s1 + $0x90] sm:$0xff]
    %v49 = vld [vmem:[%s1 + $0x98] sm:$0xff]
    %v50 = vld [vmem:[%s1 + $0xa0] sm:$0xff]
    %v51 = vld [vmem:[%s1 + $0xa8] sm:$0xff]
    %v52 = vld [vmem:[%s1 + $0xb0] sm:$0xff]
    %v53 = vld [vmem:[%s1 + $0xb8] sm:$0xff]
    %v54 = vld [vmem:[%s1 + $0xc0] sm:$0xff]
    %v55 = vld [vmem:[%s1 + $0xc8] sm:$0xff]
    %v56 = vld [vmem:[%s1 + $0xd0] sm:$0xff]
    %v57 = vld [vmem:[%s1 + $0xd8] sm:$0xff]
    %v58 = vld [vmem:[%s1 + $0xe0] sm:$0xff]
    %v59 = vld [vmem:[%s1 + $0xe8] sm:$0xff]
    %v60 = vld [vmem:[%s1 + $0xf0] sm:$0xff]
    %v61 = vld [vmem:[%s1 + $0xf8] sm:$0xff]
    %v62 = vld [vmem:[%s1 + $0x100] sm:$0xff]
    %v63 = vld [vmem:[%s1 + $0x108] sm:$0xff]
    %v64 = vld [vmem:[%s1 + $0x110] sm:$0xff]
    %v65 = vld [vmem:[%s1 + $0x118] sm:$0xff]
    %v66 = vld [vmem:[%s1 + $0x120] sm:$0xff]
    %v67 = vld [vmem:[%s1 + $0x128] sm:$0xff]
    %v68 = vld [vmem:[%s1 + $0x130] sm:$0xff]
    %v69 = vld [vmem:[%s1 + $0x138] sm:$0xff]
    %v70 = vld [vmem:[%s1 + $0x140] sm:$0xff]
    %v71 = vld [vmem:[%s1 + $0x148] sm:$0xff]
    %v72 = vld [vmem:[%s1 + $0x150] sm:$0xff]
    %v73 = vld [vmem:[%s1 + $0x158] sm:$0xff]
    %v74 = vld [vmem:[%s1 + $0x160] sm:$0xff]
    %v75 = vld [vmem:[%s1 + $0x168] sm:$0xff]
    %v76 = vld [vmem:[%s1 + $0x170] sm:$0xff]
    %v77 = vld [vmem:[%s1 + $0x178] sm:$0xff]
    %v78 = vld [vmem:[%s1 + $0x180] sm:$0xff]
    %v79 = vld [vmem:[%s1 + $0x188] sm:$0xff]
    %v80 = vld [vmem:[%s1 + $0x190] sm:$0xff]
    %v81 = vld [vmem:[%s1 + $0x198] sm:$0xff]
    %v82 = vld [vmem:[%s1 + $0x1a0] sm:$0xff]
    %v83 = vld [vmem:[%s1 + $0x1a8] sm:$0xff]
    %v84 = vld [vmem:[%s1 + $0x1b0] sm:$0xff]
    %v85 = vld [vmem:[%s1 + $0x1b8] sm:$0xff]
    %v86 = vld [vmem:[%s1 + $0x1c0] sm:$0xff]
    %v87 = vld [vmem:[%s1 + $0x1c8] sm:$0xff]
    %v88 = vld [vmem:[%s1 + $0x1d0] sm:$0xff]
    %v89 = vld [vmem:[%s1 + $0x1d8] sm:$0xff]
    %v90 = vld [vmem:[%s1 + $0x1e0] sm:$0xff]
    %v91 = vld [vmem:[%s1 + $0x1e8] sm:$0xff]
    %v92 = vld [vmem:[%s1 + $0x1f0] sm:$0xff]
    %v93 = vld [vmem:[%s1 + $0x1f8] sm:$0xff]
    %v94 = vld [vmem:[%s1 + $0x200] sm:$0xff]
    %v95 = vld [vmem:[%s1 + $0x208] sm:$0xff]
    %v96 = vld [vmem:[%s1 + $0x210] sm:$0xff]
    %v97 = vld [vmem:[%s1 + $0x218] sm:$0xff]
    %v98 = vld [vmem:[%s1 + $0x220] sm:$0xff]
    %v99 = vld [vmem:[%s1 + $0x228] sm:$0xff]
    %v100 = vld [vmem:[%s1 + $0x230] sm:$0xff]
    %v101 = vld [vmem:[%s1 + $0x238] sm:$0xff]
    %v102 = vld [vmem:[%s1 + $0x240] sm:$0xff]
    %v103 = vld [vmem:[%s1 + $0x248] sm:$0xff]
    %v104 = vld [vmem:[%s1 + $0x250] sm:$0xff]
    %v105 = vld [vmem:[%s1 + $0x258] sm:$0xff]
    %v106 = vld [vmem:[%s1 + $0x260] sm:$0xff]
    %v107 = vld [vmem:[%s1 + $0x268] sm:$0xff]
    %v108 = vld [vmem:[%s1 + $0x270] sm:$0xff]
    %v109 = vld [vmem:[%s1 + $0x278] sm:$0xff]
    %v110 = vld [vmem:[%s1 + $0x280] sm:$0xff]
    %v111 = vld [vmem:[%s1 + $0x288] sm:$0xff]
    %v112 = vld [vmem:[%s1 + $0x290] sm:$0xff]
    %v113 = vld [vmem:[%s1 + $0x298] sm:$0xff]
    %v114 = vld [vmem:[%s1 + $0x2a0] sm:$0xff]
    %v115 = vld [vmem:[%s1 + $0x2a8] sm:$0xff]
    %v116 = vld [vmem:[%s1 + $0x2b0] sm:$0xff]
    %v117 = vld [vmem:[%s1 + $0x2b8] sm:$0xff]
    %v118 = vld [vmem:[%s1 + $0x2c0] sm:$0xff]
    %v119 = vld [vmem:[%s1 + $0x2c8] sm:$0xff]
    %v120 = vpack.c.bf16 %v32, %v30
    %v121 = vpack.c.bf16 %v33, %v31
    %v122 = vpack.c.bf16 %v36, %v34
    %v123 = vpack.c.bf16 %v37, %v35
    %v124 = vpack.c.bf16 %v40, %v38
    %v125 = vpack.c.bf16 %v41, %v39
    %v126 = vpack.c.bf16 %v44, %v42
    %v127 = vpack.c.bf16 %v45, %v43
    %v128 = vpack.c.bf16 %v48, %v46
    %v129 = vpack.c.bf16 %v49, %v47
    %v130 = vpack.c.bf16 %v52, %v50
    %v131 = vpack.c.bf16 %v53, %v51
    %v132 = vpack.c.bf16 %v56, %v54
    %v133 = vpack.c.bf16 %v57, %v55
    %v134 = vpack.c.bf16 %v60, %v58
    %v135 = vpack.c.bf16 %v61, %v59
    %v136 = vpack.c.bf16 %v64, %v62
    %v137 = vpack.c.bf16 %v65, %v63
    %v138 = vpack.c.bf16 %v68, %v66
    %v139 = vpack.c.bf16 %v69, %v67
    %v140 = vpack.c.bf16 %v72, %v70
    %v141 = vpack.c.bf16 %v73, %v71
    %v142 = vpack.c.bf16 %v76, %v74
    %v143 = vpack.c.bf16 %v77, %v75
    %v144 = vpack.c.bf16 %v80, %v78
    %v145 = vpack.c.bf16 %v81, %v79
    %v146 = vpack.c.bf16 %v84, %v82
    %v147 = vpack.c.bf16 %v85, %v83
    %v148 = vpack.c.bf16 %v88, %v86
    %v149 = vpack.c.bf16 %v89, %v87
    %v150 = vpack.c.bf16 %v92, %v90
    %v151 = vpack.c.bf16 %v93, %v91
    %v152 = vpack.c.bf16 %v96, %v94
    %v153 = vpack.c.bf16 %v97, %v95
    %v154 = vpack.c.bf16 %v100, %v98
    %v155 = vpack.c.bf16 %v101, %v99
    %v156 = vpack.c.bf16 %v104, %v102
    %v157 = vpack.c.bf16 %v105, %v103
    %v158 = vpack.c.bf16 %v108, %v106
    %v159 = vpack.c.bf16 %v109, %v107
    %v160 = vpack.c.bf16 %v112, %v110
    %v161 = vpack.c.bf16 %v113, %v111
    %v162 = vpack.c.bf16 %v116, %v114
    %v163 = vpack.c.bf16 %v117, %v115
    %v164 = vpack.c.bf16 %v118, %v118
    %v165 = vpack.c.bf16 %v119, %v119
    %v166 = vld [vmem:[%s2] sm:$0x3]
    %v168 = vlaneseq
    %v169 = vshrl.u32 %v168, 7
    %v170 = vsub.s32 0, %v169
    %v171 = vrot.slane %v166, %v170
    %v172 = vlaneseq
    %v173 = vshrl.u32 %v172, 7
    %v174 = vsub.s32 1, %v173
    %v175 = vrot.slane %v166, %v174
    %vm178 = vcmask 850944
    %v180 = vsel %vm178, %v29, 0
    %vm182 = vcmask 1043456
    %v184 = vsel %vm182, %v164, 0
    %v187 = vsel %vm182, %v165, 0
    %189 = vmatprep.subr.bf16.mxu0 %v121
    %190 = vmatpush1.bf16.msra.mxu0 %v120
    %191 = vmatprep.subr.bf16.mxu0 %v123
    %192 = vmatpush1.bf16.msra.mxu0 %v122
    %193 = vmatprep.subr.bf16.mxu0 %v125
    %194 = vmatpush1.bf16.msra.mxu0 %v124
    %195 = vmatprep.subr.bf16.mxu0 %v127
    %196 = vmatpush1.bf16.msra.mxu0 %v126
    %197 = vmatprep.subr.bf16.mxu0 %v129
    %198 = vmatpush1.bf16.msra.mxu0 %v128
    %199 = vmatprep.subr.bf16.mxu0 %v131
    %200 = vmatpush1.bf16.msra.mxu0 %v130
    %201 = vmatprep.subr.bf16.mxu0 %v133
    %202 = vmatpush1.bf16.msra.mxu0 %v132
    %203 = vmatprep.subr.bf16.mxu0 %v135
    %204 = vmatpush1.bf16.msra.mxu0 %v134
    %205 = vmatprep.subr.bf16.mxu0 %v137
    %206 = vmatpush1.bf16.msra.mxu0 %v136
    %207 = vmatprep.subr.bf16.mxu0 %v139
    %208 = vmatpush1.bf16.msra.mxu0 %v138
    %209 = vmatprep.subr.bf16.mxu0 %v141
    %210 = vmatpush1.bf16.msra.mxu0 %v140
    %211 = vmatprep.subr.bf16.mxu0 %v143
    %212 = vmatpush1.bf16.msra.mxu0 %v142
    %213 = vmatprep.subr.bf16.mxu0 %v145
    %214 = vmatpush1.bf16.msra.mxu0 %v144
    %215 = vmatprep.subr.bf16.mxu0 %v147
    %216 = vmatpush1.bf16.msra.mxu0 %v146
    %217 = vmatprep.subr.bf16.mxu0 %v149
    %218 = vmatpush1.bf16.msra.mxu0 %v148
    %219 = vmatprep.subr.bf16.mxu0 %v151
    %220 = vmatpush1.bf16.msra.mxu0 %v150
    %221 = vmatprep.mubr.bf16.mxu0 %v28
    %222 = vmatmul.mubr.bf16.gmra.mrb[0].mxu0 %v27
    %v223 = vpop.f32.mrb[0].mxu0
    %v224 = vadd.f32 %v171, %v223
    %v225 = vpop.f32.mrb[0].mxu0
    %v226 = vadd.f32 %v175, %v225
    %v227 = vpop.f32.mrb[0].mxu0
    %v228 = vpop.f32.mrb[0].mxu0
    %229 = vdwg.mxu0
    %230 = vmatprep.subr.bf16.mxu0 %v153
    %231 = vmatpush1.bf16.msra.mxu0 %v152
    %232 = vmatprep.subr.bf16.mxu0 %v155
    %233 = vmatpush1.bf16.msra.mxu0 %v154
    %234 = vmatprep.subr.bf16.mxu0 %v157
    %235 = vmatpush1.bf16.msra.mxu0 %v156
    %236 = vmatprep.subr.bf16.mxu0 %v159
    %237 = vmatpush1.bf16.msra.mxu0 %v158
    %238 = vmatprep.subr.bf16.mxu0 %v161
    %239 = vmatpush1.bf16.msra.mxu0 %v160
    %240 = vmatprep.subr.bf16.mxu0 %v163
    %241 = vmatpush1.bf16.msra.mxu0 %v162
    %242 = vmatprep.subr.bf16.mxu0 %v187
    %243 = vmatpush1.bf16.msra.mxu0 %v184
    %244 = vmatprep.subr.bf16.mxu0 0
    %245 = vmatpush1.bf16.msra.mxu0 0
    %246 = vmatprep.subr.bf16.mxu0 0
    %247 = vmatpush1.bf16.msra.mxu0 0
    %248 = vmatprep.subr.bf16.mxu0 0
    %249 = vmatpush1.bf16.msra.mxu0 0
    %250 = vmatprep.subr.bf16.mxu0 0
    %251 = vmatpush1.bf16.msra.mxu0 0
    %252 = vmatprep.subr.bf16.mxu0 0
    %253 = vmatpush1.bf16.msra.mxu0 0
    %254 = vmatprep.subr.bf16.mxu0 0
    %255 = vmatpush1.bf16.msra.mxu0 0
    %256 = vmatprep.subr.bf16.mxu0 0
    %257 = vmatpush1.bf16.msra.mxu0 0
    %258 = vmatprep.subr.bf16.mxu0 0
    %259 = vmatpush1.bf16.msra.mxu0 0
    %260 = vmatprep.subr.bf16.mxu0 0
    %261 = vmatpush1.bf16.msra.mxu0 0
    %262 = vmatprep.mubr.bf16.mxu0 0
    %263 = vmatmul.mubr.bf16.gmra.mrb[0].mxu0 %v180
    %v264 = vpop.f32.mrb[0].mxu0
    %v265 = vadd.f32 %v224, %v264
    %v266 = vpop.f32.mrb[0].mxu0
    %v267 = vadd.f32 %v226, %v266
    %v268 = vpop.f32.mrb[0].mxu0
    %v269 = vpop.f32.mrb[0].mxu0
    %270 = vdwg.mxu0
    %v271 = vmax.f32 %v265, 0.0
    %v272 = vmax.f32 %v267, 0.0
    %v273 = vld [vmem:[%s3] sm:$0x3]
    %v275 = vlaneseq
    %v276 = vshrl.u32 %v275, 7
    %v277 = vsub.s32 0, %v276
    %v278 = vrot.slane %v273, %v277
    %v279 = vlaneseq
    %v280 = vshrl.u32 %v279, 7
    %v281 = vsub.s32 1, %v280
    %v282 = vrot.slane %v273, %v281
    %v285 = vmul.f32 %v271, %v278
    %v286 = vmul.f32 %v272, %v282
    %vm287 = vcmask 424960
    %v288 = vsel %vm287, %v286, 0.0
    %v289 = vadd.f32 %v285, %v288
    %290 = vadd.xlane.f32.xlu0 %v289
    %v291 = vpop.xlane.xlu0 %290
    %292 = vxpose.xlu0.b32.start [1/16] %v291, 128
    %293 = vxpose.xlu0.b32.cont [2/16] 0.0, 128
    %294 = vxpose.xlu0.b32.cont [3/16] 0.0, 128
    %295 = vxpose.xlu0.b32.cont [4/16] 0.0, 128
    %296 = vxpose.xlu0.b32.cont [5/16] 0.0, 128
    %297 = vxpose.xlu0.b32.cont [6/16] 0.0, 128
    %298 = vxpose.xlu0.b32.cont [7/16] 0.0, 128
    %299 = vxpose.xlu0.b32.cont [8/16] 0.0, 128
    %300 = vxpose.xlu0.b32.cont [9/16] 0.0, 128
    %301 = vxpose.xlu0.b32.cont [10/16] 0.0, 128
    %302 = vxpose.xlu0.b32.cont [11/16] 0.0, 128
    %303 = vxpose.xlu0.b32.cont [12/16] 0.0, 128
    %304 = vxpose.xlu0.b32.cont [13/16] 0.0, 128
    %305 = vxpose.xlu0.b32.cont [14/16] 0.0, 128
    %306 = vxpose.xlu0.b32.cont [15/16] 0.0, 128
    %307 = vxpose.xlu0.b32.end [16/16] 0.0, 128
    %v308 = vpop.trf.xlu0
    %v309 = vpop.trf.xlu0
    %v310 = vpop.trf.xlu0
    %v311 = vpop.trf.xlu0
    %v312 = vpop.trf.xlu0
    %v313 = vpop.trf.xlu0
    %v314 = vpop.trf.xlu0
    %v315 = vpop.trf.xlu0
    %v316 = vpop.trf.xlu0
    %v317 = vpop.trf.xlu0
    %v318 = vpop.trf.xlu0
    %v319 = vpop.trf.xlu0
    %v320 = vpop.trf.xlu0
    %v321 = vpop.trf.xlu0
    %v322 = vpop.trf.xlu0
    %v323 = vpop.trf.xlu0
    %v324 = vld [vmem:[#allocation2] sm:$0x1]
    %326 = vset.pattern.permute.xlu0 0
    %327 = vperm.xlu0 %326, %v324
    %v328 = vpop.permute.xlu0 %327
    %v330 = vlaneseq
    %v331 = vshrl.u32 %v330, 7
    %v332 = vsub.s32 0, %v331
    %v333 = vrot.slane %v328, %v332
    %v334 = vadd.f32 %v308, %v333
    %v335 = vsub.f32 0.0, %v334
    %v336 = vmul.f32 %v335, 1.442695
    %v337 = vpow.pop %v336
    %v338 = vadd.f32 %v337, 1.0
    %v339 = vrcp.pop %v338
    %vm340 = vcmask 57344
    %341 = vst.msk [vmem:[#allocation3] sm:$0x1] %vm340, %v339
    // Predicated region
    $region22: #{tpu_custom_call.1} parent=1 // pred_check
      _
    $region23: #{tpu_custom_call.1} parent=1 // pred_check_branch
      %343 = sbr.rel (0) target = $region25
    $region24: #{tpu_custom_call.1} parent=1 // pred_region
      %s345 = ssub.s32 16, 16
      %346 = vsyncadd [#allocation4], %s345
      %s348 = sshll.u32 [#allocation3], 4
      %s349 = int_to_ptr.vmem [resolvable:$true] %s348
      %351 = dma.vmem_to_hbm [thread:$0]  %s349, 16, %s5, [#allocation4]
    $region25: #{tpu_custom_call.1} parent=1 // pred_fallthru
      _
    // Predicated region
    $region26: #{tpu_custom_call.1} parent=1 // pred_check
      _
    $region27: #{tpu_custom_call.1} parent=1 // pred_check_branch
      %353 = sbr.rel (0) target = $region29
    $region28: #{tpu_custom_call.1} parent=1 // pred_region
      %354 = dma.done [#allocation4], 16
    $region29: #{tpu_custom_call.1} parent=1 // pred_fallthru
      _
    %355 = vsyncpa [#allocation4], 1

</llo_original>
